<compile_context>
chip_gen: v6e
topology: v6e:2x2x1
jax: 0.10.0
libtpu: 0.0.40
codegen_flags: <defaults>
</compile_context>

<pallas_src>
import functools

import jax
import jax.numpy as jnp
from jax.experimental import pallas as pl
from jax.experimental.pallas import tpu as pltpu


def _round_up(x, m):
    return ((x + m - 1) // m) * m


def siamese_kernel(eeg_ref, pos_ref, neg_ref,
                   w_eeg_ref, w_pos_ref, w_neg_ref,
                   b_eeg_ref, b_delta_ref,
                   out_ref,
                   acc_eeg, acc_delta,
                   *, n_k_eeg, n_k_img):
    k = pl.program_id(1)
    n_k = pl.num_programs(1)

    @pl.when(k == 0)
    def _init():
        # Fold the biases into the accumulators up front: the epilogue is
        # then just one multiply + one lane reduction.
        acc_eeg[...] = jnp.broadcast_to(b_eeg_ref[...], acc_eeg.shape)
        acc_delta[...] = jnp.broadcast_to(b_delta_ref[...], acc_delta.shape)

    def _acc_eeg():
        acc_eeg[...] += jnp.dot(eeg_ref[...], w_eeg_ref[...],
                                preferred_element_type=jnp.float32)

    def _acc_delta():
        # delta = neg_emb - pos_emb, accumulated per K tile.
        acc_delta[...] += (
            jnp.dot(neg_ref[...], w_neg_ref[...],
                    preferred_element_type=jnp.float32)
            - jnp.dot(pos_ref[...], w_pos_ref[...],
                      preferred_element_type=jnp.float32))

    # Statically drop the guard when a branch covers every K step; otherwise
    # gate it (its input block index is clamped, so no extra DMA happens on
    # the skipped steps).
    if n_k_eeg == n_k:
        _acc_eeg()
    else:
        pl.when(k < n_k_eeg)(_acc_eeg)

    if n_k_img == n_k:
        _acc_delta()
    else:
        pl.when(k < n_k_img)(_acc_delta)

    @pl.when(k == n_k - 1)
    def _finalize():
        # Fused compatibility + triplet loss: one multiply, one lane reduction.
        red = jnp.sum(acc_eeg[...] * acc_delta[...], axis=1, keepdims=True)
        # NOTE: output is (TB, 1) (lane width 1 -> masked stores). Output
        # volume is only B floats total, so a lane-dense relayout (which would
        # need an in-kernel sublane->lane transpose) is deliberately skipped.
        out_ref[...] = jnp.maximum(red, 0.0)


def siamese_forward(eeg, positive_img, negative_img, params, *, tb=8, tk=128):
    """eeg: (B, C_eeg, T); images: (B, C, H, W)  ->  loss: (B,)

    tb: batch tile (multiple of 8; raise toward 128/256 for large batches).
    tk: contraction tile (multiple of 128).
    """
    B = eeg.shape[0]
    emb = params["w_eeg"].shape[1]

    eeg_flat = eeg.reshape(B, -1)
    pos_flat = positive_img.reshape(B, -1)
    neg_flat = negative_img.reshape(B, -1)
    d_eeg, d_img = eeg_flat.shape[1], pos_flat.shape[1]

    b_pad = _round_up(B, tb)
    d_eeg_p = _round_up(d_eeg, tk)
    d_img_p = _round_up(d_img, tk)
    emb_p = _round_up(emb, 128)
    n_b = b_pad // tb
    n_k_eeg = d_eeg_p // tk
    n_k_img = d_img_p // tk
    n_k = max(n_k_eeg, n_k_img)

    def pad_to(x, shape, dtype):
        out = jnp.zeros(shape, dtype)
        return out.at[:x.shape[0], :x.shape[1]].set(x.astype(dtype))

    cdt = jnp.bfloat16  # DMA / MXU operand dtype (f32 accumulation in-kernel)
    eeg_x = pad_to(eeg_flat, (b_pad, d_eeg_p), cdt)
    pos_x = pad_to(pos_flat, (b_pad, d_img_p), cdt)
    neg_x = pad_to(neg_flat, (b_pad, d_img_p), cdt)
    w_eeg = pad_to(params["w_eeg"], (d_eeg_p, emb_p), cdt)
    w_pos = pad_to(params["w_pos"], (d_img_p, emb_p), cdt)
    w_neg = pad_to(params["w_neg"], (d_img_p, emb_p), cdt)
    b_eeg = pad_to(params["b_eeg"].reshape(1, emb), (1, emb_p), jnp.float32)
    b_delta = pad_to((params["b_neg"] - params["b_pos"]).reshape(1, emb),
                     (1, emb_p), jnp.float32)

    kernel = functools.partial(siamese_kernel,
                               n_k_eeg=n_k_eeg, n_k_img=n_k_img)

    # Clamp the K block index for the shorter branch: once past its last tile
    # the block index stops changing, so Pallas issues no further DMA for it.
    def clamp_e(k):
        return jnp.minimum(k, n_k_eeg - 1)

    def clamp_i(k):
        return jnp.minimum(k, n_k_img - 1)

    # Advisory scheduling hints for XLA around the custom call.
    flops = int(2 * b_pad * (d_eeg_p + 2 * d_img_p) * emb_p)
    bytes_accessed = int(
        (eeg_x.size + pos_x.size + neg_x.size) * 2            # activations once
        + n_b * (w_eeg.size + w_pos.size + w_neg.size) * 2    # weights per batch tile
        + (b_eeg.size + b_delta.size) * 4
        + b_pad * 4)

    vmem_est = (2 * 3 * tb * tk * 2          # activation tiles, double-buffered
                + 2 * 3 * tk * emb_p * 2     # weight tiles, double-buffered
                + 2 * 2 * emb_p * 4          # biases
                + 2 * tb * 4                 # output tile
                + 2 * tb * emb_p * 4)        # f32 accumulators
    vmem_limit = int(min(48 * 2**20, max(16 * 2**20, 6 * vmem_est)))

    out = pl.pallas_call(
        kernel,
        out_shape=jax.ShapeDtypeStruct((b_pad, 1), jnp.float32),
        grid_spec=pltpu.PrefetchScalarGridSpec(
            num_scalar_prefetch=0,
            grid=(n_b, n_k),
            in_specs=[
                pl.BlockSpec((tb, tk), lambda b, k: (b, clamp_e(k))),
                pl.BlockSpec((tb, tk), lambda b, k: (b, clamp_i(k))),
                pl.BlockSpec((tb, tk), lambda b, k: (b, clamp_i(k))),
                pl.BlockSpec((tk, emb_p), lambda b, k: (clamp_e(k), 0)),
                pl.BlockSpec((tk, emb_p), lambda b, k: (clamp_i(k), 0)),
                pl.BlockSpec((tk, emb_p), lambda b, k: (clamp_i(k), 0)),
                pl.BlockSpec((1, emb_p), lambda b, k: (0, 0)),
                pl.BlockSpec((1, emb_p), lambda b, k: (0, 0)),
            ],
            out_specs=pl.BlockSpec((tb, 1), lambda b, k: (b, 0)),
            scratch_shapes=[pltpu.VMEM((tb, emb_p), jnp.float32),
                            pltpu.VMEM((tb, emb_p), jnp.float32)],
        ),
        compiler_params=pltpu.CompilerParams(
            dimension_semantics=("parallel", "arbitrary"),
            vmem_limit_bytes=vmem_limit),
        cost_estimate=pl.CostEstimate(
            flops=flops, transcendentals=0, bytes_accessed=bytes_accessed),
    )(eeg_x, pos_x, neg_x, w_eeg, w_pos, w_neg, b_eeg, b_delta)

    return out[:B, 0]


def make_params(key, d_eeg, d_img, embedding_size):
    ks = jax.random.split(key, 6)
    s_eeg = 1.0 / jnp.sqrt(jnp.float32(d_eeg))
    s_img = 1.0 / jnp.sqrt(jnp.float32(d_img))
    return {
        "w_eeg": jax.random.normal(ks[0], (d_eeg, embedding_size), jnp.float32) * s_eeg,
        "b_eeg": jax.random.normal(ks[1], (1, embedding_size), jnp.float32) * 0.01,
        "w_pos": jax.random.normal(ks[2], (d_img, embedding_size), jnp.float32) * s_img,
        "b_pos": jax.random.normal(ks[3], (1, embedding_size), jnp.float32) * 0.01,
        "w_neg": jax.random.normal(ks[4], (d_img, embedding_size), jnp.float32) * s_img,
        "b_neg": jax.random.normal(ks[5], (1, embedding_size), jnp.float32) * 0.01,
    }


def reference_forward(eeg, positive_img, negative_img, params):
    """Pure-JAX reference (same bf16 operand rounding, f32 math)."""
    B = eeg.shape[0]
    c = lambda x: x.astype(jnp.bfloat16).astype(jnp.float32)
    hp = jax.lax.Precision.HIGHEST
    eeg_emb = jnp.dot(c(eeg.reshape(B, -1)), c(params["w_eeg"]), precision=hp) + params["b_eeg"]
    pos_emb = jnp.dot(c(positive_img.reshape(B, -1)), c(params["w_pos"]), precision=hp) + params["b_pos"]
    neg_emb = jnp.dot(c(negative_img.reshape(B, -1)), c(params["w_neg"]), precision=hp) + params["b_neg"]
    pos = jnp.sum(eeg_emb * pos_emb, axis=1)
    neg = jnp.sum(eeg_emb * neg_emb, axis=1)
    return jnp.maximum(jnp.zeros_like(pos), neg - pos)


if __name__ == "__main__":
    key = jax.random.PRNGKey(0)
    B, embedding_size = 8, 128
    C_eeg, T = 4, 32            # eeg: (8, 4, 32)     -> d_eeg = 128 (1 K-tile)
    C, H, W = 3, 16, 16         # img: (8, 3, 16, 16) -> d_img = 768 (6 K-tiles)

    k_eeg, k_pos, k_neg, k_par = jax.random.split(key, 4)
    eeg = jax.random.normal(k_eeg, (B, C_eeg, T), jnp.float32)
    positive_img = jax.random.normal(k_pos, (B, C, H, W), jnp.float32)
    negative_img = jax.random.normal(k_neg, (B, C, H, W), jnp.float32)
    params = make_params(k_par, C_eeg * T, C * H * W, embedding_size)

    loss = siamese_forward(eeg, positive_img, negative_img, params, tb=8, tk=128)
    jax.block_until_ready(loss)

    ref = reference_forward(eeg, positive_img, negative_img, params)
    assert loss.shape == (B,)
    assert jnp.allclose(loss, ref, atol=1e-2, rtol=1e-2)
    print("KERNEL_OK")
</pallas_src>

<mosaic_0001>
module attributes {stable_mosaic.version = 11 : i64} {
  func.func @siamese_kernel(%arg0: i32, %arg1: i32, %arg2: memref<8x128xbf16, #tpu.memory_space<vmem>>, %arg3: memref<8x128xbf16, #tpu.memory_space<vmem>>, %arg4: memref<8x128xbf16, #tpu.memory_space<vmem>>, %arg5: memref<128x128xbf16, #tpu.memory_space<vmem>>, %arg6: memref<128x128xbf16, #tpu.memory_space<vmem>>, %arg7: memref<128x128xbf16, #tpu.memory_space<vmem>>, %arg8: memref<1x128xf32, #tpu.memory_space<vmem>>, %arg9: memref<1x128xf32, #tpu.memory_space<vmem>>, %arg10: memref<8x1xf32, #tpu.memory_space<vmem>>, %arg11: memref<8x128xf32, #tpu.memory_space<vmem>>, %arg12: memref<8x128xf32, #tpu.memory_space<vmem>>) attributes {dimension_semantics = [#tpu.dimension_semantics<parallel>, #tpu.dimension_semantics<arbitrary>], iteration_bounds = array<i64: 1, 6>, scalar_prefetch = 0 : i64, scratch_operands = 2 : i64, tpu.core_type = #tpu.core_type<tc>, window_params = [{transform_indices = @transform_0, window_bounds = array<i64: 8, 128>}, {transform_indices = @transform_1, window_bounds = array<i64: 8, 128>}, {transform_indices = @transform_2, window_bounds = array<i64: 8, 128>}, {transform_indices = @transform_3, window_bounds = array<i64: 128, 128>}, {transform_indices = @transform_4, window_bounds = array<i64: 128, 128>}, {transform_indices = @transform_5, window_bounds = array<i64: 128, 128>}, {pipeline_mode = #tpu.pipeline_mode<synchronous>, transform_indices = @transform_6, window_bounds = array<i64: 1, 128>}, {pipeline_mode = #tpu.pipeline_mode<synchronous>, transform_indices = @transform_7, window_bounds = array<i64: 1, 128>}, {transform_indices = @transform_8, window_bounds = array<i64: 8, 1>}]} {
    %c0_i32 = arith.constant 0 : i32
    %0 = arith.cmpi eq, %arg1, %c0_i32 : i32
    %1 = arith.extui %0 : i1 to i32
    %c0_i32_0 = arith.constant 0 : i32
    %2 = arith.cmpi ne, %1, %c0_i32_0 : i32
    scf.if %2 {
      %c0_15 = arith.constant 0 : index
      %c0_16 = arith.constant 0 : index
      %19 = vector.load %arg8[%c0_15, %c0_16] : memref<1x128xf32, #tpu.memory_space<vmem>>, vector<1x128xf32>
      %20 = vector.shape_cast %19 : vector<1x128xf32> to vector<1x128xf32>
      %21 = vector.broadcast %20 : vector<1x128xf32> to vector<8x128xf32>
      %c0_17 = arith.constant 0 : index
      %c0_18 = arith.constant 0 : index
      %22 = vector.load %arg11[%c0_17, %c0_18] : memref<8x128xf32, #tpu.memory_space<vmem>>, vector<8x128xf32>
      tpu.vector_store %arg11[%c0_17, %c0_18], %21 {strides = array<i32>} : memref<8x128xf32, #tpu.memory_space<vmem>>, vector<8x128xf32>,
      %c0_19 = arith.constant 0 : index
      %c0_20 = arith.constant 0 : index
      %23 = vector.load %arg9[%c0_19, %c0_20] : memref<1x128xf32, #tpu.memory_space<vmem>>, vector<1x128xf32>
      %24 = vector.shape_cast %23 : vector<1x128xf32> to vector<1x128xf32>
      %25 = vector.broadcast %24 : vector<1x128xf32> to vector<8x128xf32>
      %c0_21 = arith.constant 0 : index
      %c0_22 = arith.constant 0 : index
      %26 = vector.load %arg12[%c0_21, %c0_22] : memref<8x128xf32, #tpu.memory_space<vmem>>, vector<8x128xf32>
      tpu.vector_store %arg12[%c0_21, %c0_22], %25 {strides = array<i32>} : memref<8x128xf32, #tpu.memory_space<vmem>>, vector<8x128xf32>,
    } else {
    }
    %c1_i32 = arith.constant 1 : i32
    %3 = arith.cmpi slt, %arg1, %c1_i32 : i32
    %4 = arith.extui %3 : i1 to i32
    %c0_i32_1 = arith.constant 0 : i32
    %5 = arith.cmpi ne, %4, %c0_i32_1 : i32
    scf.if %5 {
      %c0_15 = arith.constant 0 : index
      %c0_16 = arith.constant 0 : index
      %19 = vector.load %arg11[%c0_15, %c0_16] : memref<8x128xf32, #tpu.memory_space<vmem>>, vector<8x128xf32>
      %c0_17 = arith.constant 0 : index
      %c0_18 = arith.constant 0 : index
      %20 = vector.load %arg2[%c0_17, %c0_18] : memref<8x128xbf16, #tpu.memory_space<vmem>>, vector<8x128xbf16>
      %c0_19 = arith.constant 0 : index
      %c0_20 = arith.constant 0 : index
      %21 = vector.load %arg5[%c0_19, %c0_20] : memref<128x128xbf16, #tpu.memory_space<vmem>>, vector<128x128xbf16>
      %cst_21 = arith.constant dense<0.000000e+00> : vector<8x128xf32>
      %22 = tpu.matmul %20, %21, %cst_21 {dimension_numbers = #tpu.dot_dimension_numbers<[1], [0], [0], [1], [0, 0, 1, 1], [], []>} : vector<8x128xbf16>, vector<128x128xbf16>, vector<8x128xf32> -> vector<8x128xf32>
      %23 = arith.addf %19, %22 : vector<8x128xf32>
      %c0_22 = arith.constant 0 : index
      %c0_23 = arith.constant 0 : index
      %24 = vector.load %arg11[%c0_22, %c0_23] : memref<8x128xf32, #tpu.memory_space<vmem>>, vector<8x128xf32>
      tpu.vector_store %arg11[%c0_22, %c0_23], %23 {strides = array<i32>} : memref<8x128xf32, #tpu.memory_space<vmem>>, vector<8x128xf32>,
    } else {
    }
    %c0 = arith.constant 0 : index
    %c0_2 = arith.constant 0 : index
    %6 = vector.load %arg12[%c0, %c0_2] : memref<8x128xf32, #tpu.memory_space<vmem>>, vector<8x128xf32>
    %c0_3 = arith.constant 0 : index
    %c0_4 = arith.constant 0 : index
    %7 = vector.load %arg4[%c0_3, %c0_4] : memref<8x128xbf16, #tpu.memory_space<vmem>>, vector<8x128xbf16>
    %c0_5 = arith.constant 0 : index
    %c0_6 = arith.constant 0 : index
    %8 = vector.load %arg7[%c0_5, %c0_6] : memref<128x128xbf16, #tpu.memory_space<vmem>>, vector<128x128xbf16>
    %cst = arith.constant dense<0.000000e+00> : vector<8x128xf32>
    %9 = tpu.matmul %7, %8, %cst {dimension_numbers = #tpu.dot_dimension_numbers<[1], [0], [0], [1], [0, 0, 1, 1], [], []>} : vector<8x128xbf16>, vector<128x128xbf16>, vector<8x128xf32> -> vector<8x128xf32>
    %c0_7 = arith.constant 0 : index
    %c0_8 = arith.constant 0 : index
    %10 = vector.load %arg3[%c0_7, %c0_8] : memref<8x128xbf16, #tpu.memory_space<vmem>>, vector<8x128xbf16>
    %c0_9 = arith.constant 0 : index
    %c0_10 = arith.constant 0 : index
    %11 = vector.load %arg6[%c0_9, %c0_10] : memref<128x128xbf16, #tpu.memory_space<vmem>>, vector<128x128xbf16>
    %cst_11 = arith.constant dense<0.000000e+00> : vector<8x128xf32>
    %12 = tpu.matmul %10, %11, %cst_11 {dimension_numbers = #tpu.dot_dimension_numbers<[1], [0], [0], [1], [0, 0, 1, 1], [], []>} : vector<8x128xbf16>, vector<128x128xbf16>, vector<8x128xf32> -> vector<8x128xf32>
    %13 = arith.subf %9, %12 : vector<8x128xf32>
    %14 = arith.addf %6, %13 : vector<8x128xf32>
    %c0_12 = arith.constant 0 : index
    %c0_13 = arith.constant 0 : index
    %15 = vector.load %arg12[%c0_12, %c0_13] : memref<8x128xf32, #tpu.memory_space<vmem>>, vector<8x128xf32>
    tpu.vector_store %arg12[%c0_12, %c0_13], %14 {strides = array<i32>} : memref<8x128xf32, #tpu.memory_space<vmem>>, vector<8x128xf32>,
    %c5_i32 = arith.constant 5 : i32
    %16 = arith.cmpi eq, %arg1, %c5_i32 : i32
    %17 = arith.extui %16 : i1 to i32
    %c0_i32_14 = arith.constant 0 : i32
    %18 = arith.cmpi ne, %17, %c0_i32_14 : i32
    scf.if %18 {
      %c0_15 = arith.constant 0 : index
      %c0_16 = arith.constant 0 : index
      %19 = vector.load %arg11[%c0_15, %c0_16] : memref<8x128xf32, #tpu.memory_space<vmem>>, vector<8x128xf32>
      %c0_17 = arith.constant 0 : index
      %c0_18 = arith.constant 0 : index
      %20 = vector.load %arg12[%c0_17, %c0_18] : memref<8x128xf32, #tpu.memory_space<vmem>>, vector<8x128xf32>
      %21 = arith.mulf %19, %20 : vector<8x128xf32>
      %cst_19 = arith.constant dense<0.000000e+00> : vector<8xf32>
      %22 = vector.multi_reduction <add>, %21, %cst_19 [1] : vector<8x128xf32> to vector<8xf32>
      %23 = vector.shape_cast %22 : vector<8xf32> to vector<8x1xf32>
      %cst_20 = arith.constant 0.000000e+00 : f32
      %24 = vector.broadcast %cst_20 : f32 to vector<8x1xf32>
      %25 = arith.maximumf %23, %24 : vector<8x1xf32>
      %c0_21 = arith.constant 0 : index
      %c0_22 = arith.constant 0 : index
      %26 = vector.load %arg10[%c0_21, %c0_22] : memref<8x1xf32, #tpu.memory_space<vmem>>, vector<8x1xf32>
      tpu.vector_store %arg10[%c0_21, %c0_22], %25 {strides = array<i32>} : memref<8x1xf32, #tpu.memory_space<vmem>>, vector<8x1xf32>,
    } else {
    }
    return
  }
  func.func @transform_0(%arg0: i32, %arg1: i32) -> (i32, i32) {
    %c0_i32 = arith.constant 0 : i32
    %0 = arith.minsi %arg1, %c0_i32 : i32
    %c0_i32_0 = arith.constant 0 : i32
    return %arg0, %0 : i32, i32
  }
  func.func @transform_1(%arg0: i32, %arg1: i32) -> (i32, i32) {
    %c5_i32 = arith.constant 5 : i32
    %0 = arith.minsi %arg1, %c5_i32 : i32
    %c0_i32 = arith.constant 0 : i32
    return %arg0, %0 : i32, i32
  }
  func.func @transform_2(%arg0: i32, %arg1: i32) -> (i32, i32) {
    %c5_i32 = arith.constant 5 : i32
    %0 = arith.minsi %arg1, %c5_i32 : i32
    %c0_i32 = arith.constant 0 : i32
    return %arg0, %0 : i32, i32
  }
  func.func @transform_3(%arg0: i32, %arg1: i32) -> (i32, i32) {
    %c0_i32 = arith.constant 0 : i32
    %0 = arith.minsi %arg1, %c0_i32 : i32
    %c0_i32_0 = arith.constant 0 : i32
    %c0_i32_1 = arith.constant 0 : i32
    return %0, %c0_i32_0 : i32, i32
  }
  func.func @transform_4(%arg0: i32, %arg1: i32) -> (i32, i32) {
    %c5_i32 = arith.constant 5 : i32
    %0 = arith.minsi %arg1, %c5_i32 : i32
    %c0_i32 = arith.constant 0 : i32
    %c0_i32_0 = arith.constant 0 : i32
    return %0, %c0_i32 : i32, i32
  }
  func.func @transform_5(%arg0: i32, %arg1: i32) -> (i32, i32) {
    %c5_i32 = arith.constant 5 : i32
    %0 = arith.minsi %arg1, %c5_i32 : i32
    %c0_i32 = arith.constant 0 : i32
    %c0_i32_0 = arith.constant 0 : i32
    return %0, %c0_i32 : i32, i32
  }
  func.func @transform_6(%arg0: i32, %arg1: i32) -> (i32, i32) {
    %c0_i32 = arith.constant 0 : i32
    %c0_i32_0 = arith.constant 0 : i32
    %c0_i32_1 = arith.constant 0 : i32
    return %c0_i32, %c0_i32_0 : i32, i32
  }
  func.func @transform_7(%arg0: i32, %arg1: i32) -> (i32, i32) {
    %c0_i32 = arith.constant 0 : i32
    %c0_i32_0 = arith.constant 0 : i32
    %c0_i32_1 = arith.constant 0 : i32
    return %c0_i32, %c0_i32_0 : i32, i32
  }
  func.func @transform_8(%arg0: i32, %arg1: i32) -> (i32, i32) {
    %c0_i32 = arith.constant 0 : i32
    %c0_i32_0 = arith.constant 0 : i32
    return %arg0, %c0_i32 : i32, i32
  }
}

</mosaic_0001>

<llo_original>
// kernel: tpu_custom_call.1
$region0: #{tpu_custom_call.1}
  #allocation0 [shape = 'u32[]', space=smem, size = 0x4, offset = 0x4, fixed_abs, tag = 'smem constant byte address 0x4 - core index']
  #allocation1 [shape = 'u32[144,128]{1,0:T(1,128)}', space=vmem, size = 0x12000, scoped, tag = 'internal scratch']
  #allocation2 [shape = 'f32[8,128]{1,0:T(8,128)}', space=vmem, size = 0x1000, scoped, tag = 'scratch operand']
  #allocation3 [shape = 'f32[8,128]{1,0:T(8,128)}', space=vmem, size = 0x1000, scoped, tag = 'scratch operand']
  %s0 = inlined_call_operand.hbm [shape: bf16[8,128], index: 0, kind: input, shape index: {}]
  %s1 = inlined_call_operand.hbm [shape: bf16[8,768], index: 1, kind: input, shape index: {}]
  %s2 = inlined_call_operand.hbm [shape: bf16[8,768], index: 2, kind: input, shape index: {}]
  %s3 = inlined_call_operand.hbm [shape: bf16[128,128], index: 3, kind: input, shape index: {}]
  %s4 = inlined_call_operand.hbm [shape: bf16[768,128], index: 4, kind: input, shape index: {}]
  %s5 = inlined_call_operand.hbm [shape: bf16[768,128], index: 5, kind: input, shape index: {}]
  %s6 = inlined_call_operand.vmem [shape: f32[1,128], index: 6, kind: input, shape index: {}]
  %s7 = inlined_call_operand.vmem [shape: f32[1,128], index: 7, kind: input, shape index: {}]
  %s8 = inlined_call_operand.vmem [shape: f32[8,1], index: 8, kind: output, shape index: {}]
  %s9 = sld [smem:[#allocation0]]
  $region101: #{tpu_custom_call.1} parent=0
    _
  %s11 = ssub.s32 1, %s9
  %s12 = scalar_select 0, %s11, %s9
  $region1: #{tpu_custom_call.1} parent=0
    #allocation4 [shape = 'u8[4096]{0}', space=vmem, size = 0x1000, scoped, tag = 'input window, operand 0']
    #allocation5 [shape = 's32[2]{0}', space=sflag, size = 0x8, scoped, tag = 'scoped memory for tpu_custom_call.1']
    #allocation6 [shape = 'u8[4096]{0}', space=vmem, size = 0x1000, scoped, tag = 'input window, operand 1']
    #allocation7 [shape = 's32[2]{0}', space=sflag, size = 0x8, scoped, tag = 'scoped memory for tpu_custom_call.1']
    #allocation8 [shape = 'u8[4096]{0}', space=vmem, size = 0x1000, scoped, tag = 'input window, operand 2']
    #allocation9 [shape = 'u8[65536]{0}', space=vmem, size = 0x10000, scoped, tag = 'input window, operand 3']
    #allocation10 [shape = 's32[2]{0}', space=sflag, size = 0x8, scoped, tag = 'scoped memory for tpu_custom_call.1']
    #allocation11 [shape = 'u8[65536]{0}', space=vmem, size = 0x10000, scoped, tag = 'input window, operand 4']
    #allocation12 [shape = 'u8[65536]{0}', space=vmem, size = 0x10000, scoped, tag = 'input window, operand 5']
    #allocation13 [shape = 's32[2]{0}', space=sflag, size = 0x8, scoped, tag = 'scoped memory for tpu_custom_call.1']
    %13 = vsyncpa [#allocation5], 0
    %s14 = scalar_lea.sflag [#allocation5], 1
    %15 = vsyncpa %s14, 0
    %16 = vsyncpa [#allocation7], 0
    %s17 = scalar_lea.sflag [#allocation7], 1
    %18 = vsyncpa %s17, 0
    %19 = vsyncpa [#allocation10], 0
    %s20 = scalar_lea.sflag [#allocation10], 1
    %21 = vsyncpa %s20, 0
    %22 = vsyncpa [#allocation13], 0
    %s23 = scalar_lea.sflag [#allocation13], 1
    %24 = vsyncpa %s23, 0
    loop: start=0, step=1, limit=8
    $region2: #{tpu_custom_call.1} parent=1 // loop_pre_header
      _
    $region3: #{tpu_custom_call.1} parent=1 // loop_header
      %s26 = sphi 0, %s30
      %p27 = scmp.ge.s32.totalorder %s26, 8
      %s33 = sphi 0, %s45
      %s34 = sphi 0, %s41
      %s35 = sphi 0, %s33
      %s36 = sphi 0, %s34
      %s37 = sphi 0, %s35
      %s38 = sphi 0, %s36
      %s54 = sphi 0, %s56
      %s57 = sphi 0, %s54
      %s58 = sphi 0, %s57
      %s74 = sphi 0, %s58
      %s86 = sphi 0, %s88
      %s89 = sphi 0, %s86
      %s90 = sphi 0, %s89
      %s106 = sphi 0, %s90
      %s118 = sphi 0, %s120
      %s121 = sphi 0, %s118
      %s122 = sphi 0, %s121
      %s138 = sphi 0, %s122
      %s148 = sphi 0, %s150
      %s151 = sphi 0, %s148
      %s152 = sphi 0, %s151
      %s168 = sphi 0, %s152
      %s178 = sphi 0, %s180
      %s181 = sphi 0, %s178
      %s182 = sphi 0, %s181
      %s198 = sphi 0, %s182
      %s208 = sphi 0, %s210
      %s211 = sphi 0, %s208
      %s212 = sphi 0, %s211
      %s228 = sphi 0, %s212
      %s232 = sphi 0, %s232
      %s234 = sphi 0, %s232
      %s235 = sphi 0, %s234
      %s249 = sphi 0, %s235
      %s253 = sphi 0, %s253
      %s255 = sphi 0, %s253
      %s256 = sphi 0, %s255
      %s270 = sphi 0, %s256
      %s276 = sphi 0, %s278
      %s279 = sphi 0, %s276
      %s280 = sphi 0, %s279
      %s296 = sphi 0, %s280
    $region4: #{tpu_custom_call.1} parent=1 // loop_header_branch
      %29 = sbr.rel (%p27) target = $region8
    $region5: #{tpu_custom_call.1} parent=1 // loop_body
      %s31 = ssub.s32 %s26, 1
      %s32 = ssub.s32 %s26, 2
      %s39 = sadd.s32 1, %s34
      %p40 = scmp.ge.s32.totalorder %s39, 6
      %s41 = scalar_select %p40, 0, %s39
      %s42 = sadd.s32 1, %s33
      %s43 = scalar_select %p40, %s42, %s33
      %p44 = scmp.ge.s32.totalorder %s43, 1
      %s45 = scalar_select %p44, 0, %s43
      %p46 = scmp.lt.s32.totalorder %s34, 0
      %s47 = scalar_select %p46, %s34, 0
      %p48 = scmp.lt.s32.totalorder %s41, 0
      %s49 = scalar_select %p48, %s41, 0
      %s50 = ssub.s32 %s33, %s45
      %s51 = ssub.s32 %s47, %s49
      %s52 = sor.u32 %s50, %s51
      %p53 = scmp.eq.s32.totalorder %s52, 0
      %s55 = sadd.s32 %s54, 1
      %s56 = scalar_select %p53, %s54, %s55
      %p59 = pneg %p53
      %p60 = scmp.eq.s32.totalorder %s26, 5
      %p61 = por %p59, %p60
      %p62 = scmp.ne.s32.totalorder %s54, %s57
      %p63 = scmp.eq.s32.totalorder %s26, 0
      %p64 = por %p62, %p63
      %p65 = scmp.ne.s32.totalorder %s54, %s57
      %p66 = scmp.eq.s32.totalorder %s31, 5
      %p67 = por %p65, %p66
      %p68 = scmp.ne.s32.totalorder %s57, %s58
      %p69 = scmp.eq.s32.totalorder %s31, 0
      %p70 = por %p68, %p69
      %p71 = scmp.ne.s32.totalorder %s57, %s58
      %p72 = scmp.eq.s32.totalorder %s32, 5
      %p73 = por %p71, %p72
      %p75 = scmp.ne.s32.totalorder %s58, %s74
      %p76 = scmp.eq.s32.totalorder %s32, 0
      %p77 = por %p75, %p76
      %p78 = scmp.lt.s32.totalorder %s34, 5
      %s79 = scalar_select %p78, %s34, 5
      %p80 = scmp.lt.s32.totalorder %s41, 5
      %s81 = scalar_select %p80, %s41, 5
      %s82 = ssub.s32 %s33, %s45
      %s83 = ssub.s32 %s79, %s81
      %s84 = sor.u32 %s82, %s83
      %p85 = scmp.eq.s32.totalorder %s84, 0
      %s87 = sadd.s32 %s86, 1
      %s88 = scalar_select %p85, %s86, %s87
      %p91 = pneg %p85
      %p92 = scmp.eq.s32.totalorder %s26, 5
      %p93 = por %p91, %p92
      %p94 = scmp.ne.s32.totalorder %s86, %s89
      %p95 = scmp.eq.s32.totalorder %s26, 0
      %p96 = por %p94, %p95
      %p97 = scmp.ne.s32.totalorder %s86, %s89
      %p98 = scmp.eq.s32.totalorder %s31, 5
      %p99 = por %p97, %p98
      %p100 = scmp.ne.s32.totalorder %s89, %s90
      %p101 = scmp.eq.s32.totalorder %s31, 0
      %p102 = por %p100, %p101
      %p103 = scmp.ne.s32.totalorder %s89, %s90
      %p104 = scmp.eq.s32.totalorder %s32, 5
      %p105 = por %p103, %p104
      %p107 = scmp.ne.s32.totalorder %s90, %s106
      %p108 = scmp.eq.s32.totalorder %s32, 0
      %p109 = por %p107, %p108
      %p110 = scmp.lt.s32.totalorder %s34, 5
      %s111 = scalar_select %p110, %s34, 5
      %p112 = scmp.lt.s32.totalorder %s41, 5
      %s113 = scalar_select %p112, %s41, 5
      %s114 = ssub.s32 %s33, %s45
      %s115 = ssub.s32 %s111, %s113
      %s116 = sor.u32 %s114, %s115
      %p117 = scmp.eq.s32.totalorder %s116, 0
      %s119 = sadd.s32 %s118, 1
      %s120 = scalar_select %p117, %s118, %s119
      %p123 = pneg %p117
      %p124 = scmp.eq.s32.totalorder %s26, 5
      %p125 = por %p123, %p124
      %p126 = scmp.ne.s32.totalorder %s118, %s121
      %p127 = scmp.eq.s32.totalorder %s26, 0
      %p128 = por %p126, %p127
      %p129 = scmp.ne.s32.totalorder %s118, %s121
      %p130 = scmp.eq.s32.totalorder %s31, 5
      %p131 = por %p129, %p130
      %p132 = scmp.ne.s32.totalorder %s121, %s122
      %p133 = scmp.eq.s32.totalorder %s31, 0
      %p134 = por %p132, %p133
      %p135 = scmp.ne.s32.totalorder %s121, %s122
      %p136 = scmp.eq.s32.totalorder %s32, 5
      %p137 = por %p135, %p136
      %p139 = scmp.ne.s32.totalorder %s122, %s138
      %p140 = scmp.eq.s32.totalorder %s32, 0
      %p141 = por %p139, %p140
      %p142 = scmp.lt.s32.totalorder %s34, 0
      %s143 = scalar_select %p142, %s34, 0
      %p144 = scmp.lt.s32.totalorder %s41, 0
      %s145 = scalar_select %p144, %s41, 0
      %s146 = ssub.s32 %s143, %s145
      %p147 = scmp.eq.s32.totalorder %s146, 0
      %s149 = sadd.s32 %s148, 1
      %s150 = scalar_select %p147, %s148, %s149
      %p153 = pneg %p147
      %p154 = scmp.eq.s32.totalorder %s26, 5
      %p155 = por %p153, %p154
      %p156 = scmp.ne.s32.totalorder %s148, %s151
      %p157 = scmp.eq.s32.totalorder %s26, 0
      %p158 = por %p156, %p157
      %p159 = scmp.ne.s32.totalorder %s148, %s151
      %p160 = scmp.eq.s32.totalorder %s31, 5
      %p161 = por %p159, %p160
      %p162 = scmp.ne.s32.totalorder %s151, %s152
      %p163 = scmp.eq.s32.totalorder %s31, 0
      %p164 = por %p162, %p163
      %p165 = scmp.ne.s32.totalorder %s151, %s152
      %p166 = scmp.eq.s32.totalorder %s32, 5
      %p167 = por %p165, %p166
      %p169 = scmp.ne.s32.totalorder %s152, %s168
      %p170 = scmp.eq.s32.totalorder %s32, 0
      %p171 = por %p169, %p170
      %p172 = scmp.lt.s32.totalorder %s34, 5
      %s173 = scalar_select %p172, %s34, 5
      %p174 = scmp.lt.s32.totalorder %s41, 5
      %s175 = scalar_select %p174, %s41, 5
      %s176 = ssub.s32 %s173, %s175
      %p177 = scmp.eq.s32.totalorder %s176, 0
      %s179 = sadd.s32 %s178, 1
      %s180 = scalar_select %p177, %s178, %s179
      %p183 = pneg %p177
      %p184 = scmp.eq.s32.totalorder %s26, 5
      %p185 = por %p183, %p184
      %p186 = scmp.ne.s32.totalorder %s178, %s181
      %p187 = scmp.eq.s32.totalorder %s26, 0
      %p188 = por %p186, %p187
      %p189 = scmp.ne.s32.totalorder %s178, %s181
      %p190 = scmp.eq.s32.totalorder %s31, 5
      %p191 = por %p189, %p190
      %p192 = scmp.ne.s32.totalorder %s181, %s182
      %p193 = scmp.eq.s32.totalorder %s31, 0
      %p194 = por %p192, %p193
      %p195 = scmp.ne.s32.totalorder %s181, %s182
      %p196 = scmp.eq.s32.totalorder %s32, 5
      %p197 = por %p195, %p196
      %p199 = scmp.ne.s32.totalorder %s182, %s198
      %p200 = scmp.eq.s32.totalorder %s32, 0
      %p201 = por %p199, %p200
      %p202 = scmp.lt.s32.totalorder %s34, 5
      %s203 = scalar_select %p202, %s34, 5
      %p204 = scmp.lt.s32.totalorder %s41, 5
      %s205 = scalar_select %p204, %s41, 5
      %s206 = ssub.s32 %s203, %s205
      %p207 = scmp.eq.s32.totalorder %s206, 0
      %s209 = sadd.s32 %s208, 1
      %s210 = scalar_select %p207, %s208, %s209
      %p213 = pneg %p207
      %p214 = scmp.eq.s32.totalorder %s26, 5
      %p215 = por %p213, %p214
      %p216 = scmp.ne.s32.totalorder %s208, %s211
      %p217 = scmp.eq.s32.totalorder %s26, 0
      %p218 = por %p216, %p217
      %p219 = scmp.ne.s32.totalorder %s208, %s211
      %p220 = scmp.eq.s32.totalorder %s31, 5
      %p221 = por %p219, %p220
      %p222 = scmp.ne.s32.totalorder %s211, %s212
      %p223 = scmp.eq.s32.totalorder %s31, 0
      %p224 = por %p222, %p223
      %p225 = scmp.ne.s32.totalorder %s211, %s212
      %p226 = scmp.eq.s32.totalorder %s32, 5
      %p227 = por %p225, %p226
      %p229 = scmp.ne.s32.totalorder %s212, %s228
      %p230 = scmp.eq.s32.totalorder %s32, 0
      %p231 = por %p229, %p230
      %s233 = sadd.s32 %s232, 1
      %p236 = scmp.eq.s32.totalorder %s26, 5
      %p237 = scmp.ne.s32.totalorder %s232, %s234
      %p238 = scmp.eq.s32.totalorder %s26, 0
      %p239 = por %p237, %p238
      %p240 = scmp.ne.s32.totalorder %s232, %s234
      %p241 = scmp.eq.s32.totalorder %s31, 5
      %p242 = por %p240, %p241
      %p243 = scmp.ne.s32.totalorder %s234, %s235
      %p244 = scmp.eq.s32.totalorder %s31, 0
      %p245 = por %p243, %p244
      %p246 = scmp.ne.s32.totalorder %s234, %s235
      %p247 = scmp.eq.s32.totalorder %s32, 5
      %p248 = por %p246, %p247
      %p250 = scmp.ne.s32.totalorder %s235, %s249
      %p251 = scmp.eq.s32.totalorder %s32, 0
      %p252 = por %p250, %p251
      %s254 = sadd.s32 %s253, 1
      %p257 = scmp.eq.s32.totalorder %s26, 5
      %p258 = scmp.ne.s32.totalorder %s253, %s255
      %p259 = scmp.eq.s32.totalorder %s26, 0
      %p260 = por %p258, %p259
      %p261 = scmp.ne.s32.totalorder %s253, %s255
      %p262 = scmp.eq.s32.totalorder %s31, 5
      %p263 = por %p261, %p262
      %p264 = scmp.ne.s32.totalorder %s255, %s256
      %p265 = scmp.eq.s32.totalorder %s31, 0
      %p266 = por %p264, %p265
      %p267 = scmp.ne.s32.totalorder %s255, %s256
      %p268 = scmp.eq.s32.totalorder %s32, 5
      %p269 = por %p267, %p268
      %p271 = scmp.ne.s32.totalorder %s256, %s270
      %p272 = scmp.eq.s32.totalorder %s32, 0
      %p273 = por %p271, %p272
      %s274 = ssub.s32 %s33, %s45
      %p275 = scmp.eq.s32.totalorder %s274, 0
      %s277 = sadd.s32 %s276, 1
      %s278 = scalar_select %p275, %s276, %s277
      %p281 = pneg %p275
      %p282 = scmp.eq.s32.totalorder %s26, 5
      %p283 = por %p281, %p282
      %p284 = scmp.ne.s32.totalorder %s276, %s279
      %p285 = scmp.eq.s32.totalorder %s26, 0
      %p286 = por %p284, %p285
      %p287 = scmp.ne.s32.totalorder %s276, %s279
      %p288 = scmp.eq.s32.totalorder %s31, 5
      %p289 = por %p287, %p288
      %p290 = scmp.ne.s32.totalorder %s279, %s280
      %p291 = scmp.eq.s32.totalorder %s31, 0
      %p292 = por %p290, %p291
      %p293 = scmp.ne.s32.totalorder %s279, %s280
      %p294 = scmp.eq.s32.totalorder %s32, 5
      %p295 = por %p293, %p294
      %p297 = scmp.ne.s32.totalorder %s280, %s296
      %p298 = scmp.eq.s32.totalorder %s32, 0
      %p299 = por %p297, %p298
      %p300 = scmp.le.s32.totalorder 1, %s26
      %p301 = scmp.lt.s32.totalorder %s26, 7
      %p302 = pnand %p300, %p301
      %p303 = pneg %p302
      // Predicated region
      $region9: #{tpu_custom_call.1} parent=5 // pred_check
        _
      $region10: #{tpu_custom_call.1} parent=5 // pred_check_branch
        %305 = sbr.rel (%p302) target = $region12
      $region11: #{tpu_custom_call.1} parent=5 // pred_region
        %s306 = ssub.s32 %s26, 1
        // Predicated region
        $region13: #{tpu_custom_call.1} parent=11 // pred_check
          %p307 = pneg %p245
        $region14: #{tpu_custom_call.1} parent=11 // pred_check_branch
          %309 = sbr.rel (%p307) target = $region16
        $region15: #{tpu_custom_call.1} parent=11 // pred_region
          _
        $region16: #{tpu_custom_call.1} parent=11 // pred_fallthru
          _
        // Predicated region
        $region17: #{tpu_custom_call.1} parent=11 // pred_check
          %p310 = pneg %p266
        $region18: #{tpu_custom_call.1} parent=11 // pred_check_branch
          %312 = sbr.rel (%p310) target = $region20
        $region19: #{tpu_custom_call.1} parent=11 // pred_region
          _
        $region20: #{tpu_custom_call.1} parent=11 // pred_fallthru
          _
      $region12: #{tpu_custom_call.1} parent=5 // pred_fallthru
        _
      %p313 = scmp.lt.s32.totalorder %s26, 6
      // Predicated region
      $region21: #{tpu_custom_call.1} parent=5 // pred_check
        %p314 = pneg %p313
      $region22: #{tpu_custom_call.1} parent=5 // pred_check_branch
        %316 = sbr.rel (%p314) target = $region24
      $region23: #{tpu_custom_call.1} parent=5 // pred_region
        // Predicated region
        $region25: #{tpu_custom_call.1} parent=23 // pred_check
          %p317 = pneg %p64
        $region26: #{tpu_custom_call.1} parent=23 // pred_check_branch
          %319 = sbr.rel (%p317) target = $region28
        $region27: #{tpu_custom_call.1} parent=23 // pred_region
          %s320 = sand.u32 %s54, 1
          %s321 = scalar_lea.sflag [#allocation5], %s320
          %s322 = sand.u32 %s54, 1
          %s323 = smul.addr %s322, 4
          %s324 = scalar_lea.vmem [#allocation4], %s323
          %p325 = scmp.lt.s32.totalorder %s34, 0
          %s326 = scalar_select %p325, %s34, 0
          %s328 = ssub.s32 64, 64
          %329 = vsyncadd %s321, %s328
          %s330 = sadd.s32 %s326, %s33
          %s331 = smul.addr %s330, 64
          %s332 = scalar_lea.hbm %s0, %s331
          %s334 = sshll.u32 %s324, 4
          %s335 = int_to_ptr.vmem [resolvable:$true] %s334
          %337 = dma.hbm_to_vmem [thread:$0]  %s332, 64, %s335, %s321
        $region28: #{tpu_custom_call.1} parent=23 // pred_fallthru
          _
        // Predicated region
        $region29: #{tpu_custom_call.1} parent=23 // pred_check
          %p338 = pneg %p96
        $region30: #{tpu_custom_call.1} parent=23 // pred_check_branch
          %340 = sbr.rel (%p338) target = $region32
        $region31: #{tpu_custom_call.1} parent=23 // pred_region
          %s341 = sand.u32 %s26, 1
          %s342 = scalar_lea.sflag [#allocation7], %s341
          %s343 = sand.u32 %s86, 1
          %s344 = smul.addr %s343, 4
          %s345 = scalar_lea.vmem [#allocation6], %s344
          %p346 = scmp.lt.s32.totalorder %s34, 5
          %s347 = scalar_select %p346, %s34, 5
          %s349 = ssub.s32 64, 64
          %350 = vsyncadd %s342, %s349
          %s351 = smul.addr %s33, 6
          %s352 = sadd.s32 %s347, %s351
          %s353 = smul.addr %s352, 64
          %s354 = scalar_lea.hbm %s1, %s353
          %s356 = sshll.u32 %s345, 4
          %s357 = int_to_ptr.vmem [resolvable:$true] %s356
          %359 = dma.hbm_to_vmem [thread:$0]  %s354, 64, %s357, %s342
        $region32: #{tpu_custom_call.1} parent=23 // pred_fallthru
          _
        // Predicated region
        $region33: #{tpu_custom_call.1} parent=23 // pred_check
          %p360 = pneg %p128
        $region34: #{tpu_custom_call.1} parent=23 // pred_check_branch
          %362 = sbr.rel (%p360) target = $region36
        $region35: #{tpu_custom_call.1} parent=23 // pred_region
          %s363 = sand.u32 %s26, 1
          %s364 = scalar_lea.sflag [#allocation7], %s363
          %s365 = sand.u32 %s118, 1
          %s366 = smul.addr %s365, 4
          %s367 = scalar_lea.vmem [#allocation8], %s366
          %p368 = scmp.lt.s32.totalorder %s34, 5
          %s369 = scalar_select %p368, %s34, 5
          %s371 = ssub.s32 64, 64
          %372 = vsyncadd %s364, %s371
          %s373 = smul.addr %s33, 6
          %s374 = sadd.s32 %s369, %s373
          %s375 = smul.addr %s374, 64
          %s376 = scalar_lea.hbm %s2, %s375
          %s378 = sshll.u32 %s367, 4
          %s379 = int_to_ptr.vmem [resolvable:$true] %s378
          %381 = dma.hbm_to_vmem [thread:$0]  %s376, 64, %s379, %s364
        $region36: #{tpu_custom_call.1} parent=23 // pred_fallthru
          _
        // Predicated region
        $region37: #{tpu_custom_call.1} parent=23 // pred_check
          %p382 = pneg %p158
        $region38: #{tpu_custom_call.1} parent=23 // pred_check_branch
          %384 = sbr.rel (%p382) target = $region40
        $region39: #{tpu_custom_call.1} parent=23 // pred_region
          %s385 = sand.u32 %s26, 1
          %s386 = scalar_lea.sflag [#allocation10], %s385
          %s387 = sand.u32 %s148, 1
          %s388 = smul.addr %s387, 64
          %s389 = scalar_lea.vmem [#allocation9], %s388
          %p390 = scmp.lt.s32.totalorder %s34, 0
          %s391 = scalar_select %p390, %s34, 0
          %s392 = smul.u32 16, %s391
          %s394 = ssub.s32 1024, 1024
          %395 = vsyncadd %s386, %s394
          %s396 = smul.addr %s392, 64
          %s397 = scalar_lea.hbm %s3, %s396
          %s398 = sshll.u32 %s389, 4
          %s399 = int_to_ptr.vmem [resolvable:$true] %s398
          %404 = dma.hbm_to_vmem [thread:$0]  %s397, 1024, %s399, %s386, 64, 64, 4
        $region40: #{tpu_custom_call.1} parent=23 // pred_fallthru
          _
        // Predicated region
        $region41: #{tpu_custom_call.1} parent=23 // pred_check
          %p405 = pneg %p188
        $region42: #{tpu_custom_call.1} parent=23 // pred_check_branch
          %407 = sbr.rel (%p405) target = $region44
        $region43: #{tpu_custom_call.1} parent=23 // pred_region
          %s408 = sand.u32 %s26, 1
          %s409 = scalar_lea.sflag [#allocation10], %s408
          %s410 = sand.u32 %s178, 1
          %s411 = smul.addr %s410, 64
          %s412 = scalar_lea.vmem [#allocation11], %s411
          %p413 = scmp.lt.s32.totalorder %s34, 5
          %s414 = scalar_select %p413, %s34, 5
          %s415 = smul.u32 16, %s414
          %s417 = ssub.s32 1024, 1024
          %418 = vsyncadd %s409, %s417
          %s419 = smul.addr %s415, 64
          %s420 = scalar_lea.hbm %s4, %s419
          %s421 = sshll.u32 %s412, 4
          %s422 = int_to_ptr.vmem [resolvable:$true] %s421
          %427 = dma.hbm_to_vmem [thread:$0]  %s420, 1024, %s422, %s409, 64, 64, 4
        $region44: #{tpu_custom_call.1} parent=23 // pred_fallthru
          _
        // Predicated region
        $region45: #{tpu_custom_call.1} parent=23 // pred_check
          %p428 = pneg %p218
        $region46: #{tpu_custom_call.1} parent=23 // pred_check_branch
          %430 = sbr.rel (%p428) target = $region48
        $region47: #{tpu_custom_call.1} parent=23 // pred_region
          %s431 = sand.u32 %s208, 1
          %s432 = scalar_lea.sflag [#allocation13], %s431
          %s433 = sand.u32 %s208, 1
          %s434 = smul.addr %s433, 64
          %s435 = scalar_lea.vmem [#allocation12], %s434
          %p436 = scmp.lt.s32.totalorder %s34, 5
          %s437 = scalar_select %p436, %s34, 5
          %s438 = smul.u32 16, %s437
          %s440 = ssub.s32 1024, 1024
          %441 = vsyncadd %s432, %s440
          %s442 = smul.addr %s438, 64
          %s443 = scalar_lea.hbm %s5, %s442
          %s444 = sshll.u32 %s435, 4
          %s445 = int_to_ptr.vmem [resolvable:$true] %s444
          %450 = dma.hbm_to_vmem [thread:$0]  %s443, 1024, %s445, %s432, 64, 64, 4
        $region48: #{tpu_custom_call.1} parent=23 // pred_fallthru
          _
      $region24: #{tpu_custom_call.1} parent=5 // pred_fallthru
        _
      %p451 = scmp.le.s32.totalorder 1, %s26
      %p452 = scmp.lt.s32.totalorder %s26, 7
      %p453 = pnand %p451, %p452
      %p454 = pneg %p453
      // Predicated region
      $region49: #{tpu_custom_call.1} parent=5 // pred_check
        _
      $region50: #{tpu_custom_call.1} parent=5 // pred_check_branch
        %456 = sbr.rel (%p453) target = $region52
      $region51: #{tpu_custom_call.1} parent=5 // pred_region
        %s457 = ssub.s32 %s26, 1
        %s458 = sand.u32 %s57, 1
        %s459 = scalar_lea.sflag [#allocation5], %s458
        %s460 = sand.u32 %s57, 1
        %s461 = smul.addr %s460, 4
        %s462 = scalar_lea.vmem [#allocation4], %s461
        // Predicated region
        $region53: #{tpu_custom_call.1} parent=51 // pred_check
          %p463 = pneg %p70
        $region54: #{tpu_custom_call.1} parent=51 // pred_check_branch
          %465 = sbr.rel (%p463) target = $region56
        $region55: #{tpu_custom_call.1} parent=51 // pred_region
          %466 = dma.done %s459, 64
        $region56: #{tpu_custom_call.1} parent=51 // pred_fallthru
          _
        %s467 = sand.u32 %s31, 1
        %s468 = scalar_lea.sflag [#allocation7], %s467
        %s469 = sand.u32 %s89, 1
        %s470 = smul.addr %s469, 4
        %s471 = scalar_lea.vmem [#allocation6], %s470
        // Predicated region
        $region57: #{tpu_custom_call.1} parent=51 // pred_check
          %p472 = pneg %p102
        $region58: #{tpu_custom_call.1} parent=51 // pred_check_branch
          %474 = sbr.rel (%p472) target = $region60
        $region59: #{tpu_custom_call.1} parent=51 // pred_region
          %475 = dma.done %s468, 64
        $region60: #{tpu_custom_call.1} parent=51 // pred_fallthru
          _
        %s476 = sand.u32 %s31, 1
        %s477 = scalar_lea.sflag [#allocation7], %s476
        %s478 = sand.u32 %s121, 1
        %s479 = smul.addr %s478, 4
        %s480 = scalar_lea.vmem [#allocation8], %s479
        // Predicated region
        $region61: #{tpu_custom_call.1} parent=51 // pred_check
          %p481 = pneg %p134
        $region62: #{tpu_custom_call.1} parent=51 // pred_check_branch
          %483 = sbr.rel (%p481) target = $region64
        $region63: #{tpu_custom_call.1} parent=51 // pred_region
          %484 = dma.done %s477, 64
        $region64: #{tpu_custom_call.1} parent=51 // pred_fallthru
          _
        %s485 = sand.u32 %s31, 1
        %s486 = scalar_lea.sflag [#allocation10], %s485
        %s487 = sand.u32 %s151, 1
        %s488 = smul.addr %s487, 64
        %s489 = scalar_lea.vmem [#allocation9], %s488
        // Predicated region
        $region65: #{tpu_custom_call.1} parent=51 // pred_check
          %p490 = pneg %p164
        $region66: #{tpu_custom_call.1} parent=51 // pred_check_branch
          %492 = sbr.rel (%p490) target = $region68
        $region67: #{tpu_custom_call.1} parent=51 // pred_region
          %493 = dma.done %s486, 1024
        $region68: #{tpu_custom_call.1} parent=51 // pred_fallthru
          _
        %s494 = sand.u32 %s31, 1
        %s495 = scalar_lea.sflag [#allocation10], %s494
        %s496 = sand.u32 %s181, 1
        %s497 = smul.addr %s496, 64
        %s498 = scalar_lea.vmem [#allocation11], %s497
        // Predicated region
        $region69: #{tpu_custom_call.1} parent=51 // pred_check
          %p499 = pneg %p194
        $region70: #{tpu_custom_call.1} parent=51 // pred_check_branch
          %501 = sbr.rel (%p499) target = $region72
        $region71: #{tpu_custom_call.1} parent=51 // pred_region
          %502 = dma.done %s495, 1024
        $region72: #{tpu_custom_call.1} parent=51 // pred_fallthru
          _
        %s503 = sand.u32 %s211, 1
        %s504 = scalar_lea.sflag [#allocation13], %s503
        %s505 = sand.u32 %s211, 1
        %s506 = smul.addr %s505, 64
        %s507 = scalar_lea.vmem [#allocation12], %s506
        // Predicated region
        $region73: #{tpu_custom_call.1} parent=51 // pred_check
          %p508 = pneg %p224
        $region74: #{tpu_custom_call.1} parent=51 // pred_check_branch
          %510 = sbr.rel (%p508) target = $region76
        $region75: #{tpu_custom_call.1} parent=51 // pred_region
          %511 = dma.done %s504, 1024
        $region76: #{tpu_custom_call.1} parent=51 // pred_fallthru
          _
        %s512 = sand.u32 %s57, 1
        %s513 = scalar_lea.sflag [#allocation5], %s512
        %s514 = sand.u32 %s57, 1
        %s515 = smul.addr %s514, 4
        %s516 = scalar_lea.vmem [#allocation4], %s515
        %p517 = pneg %p70
        %p518 = pneg %p67
        %s519 = sand.u32 %s31, 1
        %s520 = scalar_lea.sflag [#allocation7], %s519
        %s521 = sand.u32 %s89, 1
        %s522 = smul.addr %s521, 4
        %s523 = scalar_lea.vmem [#allocation6], %s522
        %p524 = pneg %p102
        %p525 = pneg %p99
        %s526 = sand.u32 %s31, 1
        %s527 = scalar_lea.sflag [#allocation7], %s526
        %s528 = sand.u32 %s121, 1
        %s529 = smul.addr %s528, 4
        %s530 = scalar_lea.vmem [#allocation8], %s529
        %p531 = pneg %p134
        %p532 = pneg %p131
        %s533 = sand.u32 %s31, 1
        %s534 = scalar_lea.sflag [#allocation10], %s533
        %s535 = sand.u32 %s151, 1
        %s536 = smul.addr %s535, 64
        %s537 = scalar_lea.vmem [#allocation9], %s536
        %p538 = pneg %p164
        %p539 = pneg %p161
        %s540 = sand.u32 %s31, 1
        %s541 = scalar_lea.sflag [#allocation10], %s540
        %s542 = sand.u32 %s181, 1
        %s543 = smul.addr %s542, 64
        %s544 = scalar_lea.vmem [#allocation11], %s543
        %p545 = pneg %p194
        %p546 = pneg %p191
        %s547 = sand.u32 %s211, 1
        %s548 = scalar_lea.sflag [#allocation13], %s547
        %s549 = sand.u32 %s211, 1
        %s550 = smul.addr %s549, 64
        %s551 = scalar_lea.vmem [#allocation12], %s550
        %p552 = pneg %p224
        %p553 = pneg %p221
        %p554 = pneg %p245
        %p555 = pneg %p242
        %p556 = pneg %p266
        %p557 = pneg %p263
        %p558 = pneg %p292
        %p559 = pneg %p289
        %p560 = scmp.lt.s32.totalorder %s35, 0
        %s561 = scalar_select %p560, %s35, 0
        %s562 = smul.addr %s561, 8
        %s563 = scalar_lea.vmem %s8, %s562
        %p564 = scmp.lt.s32.totalorder %s36, 0
        %s565 = scalar_select %p564, %s36, 0
        %p566 = scmp.lt.s32.totalorder %s36, 5
        %s567 = scalar_select %p566, %s36, 5
        %p568 = scmp.lt.s32.totalorder %s36, 5
        %s569 = scalar_select %p568, %s36, 5
        %p570 = scmp.lt.s32.totalorder %s36, 0
        %s571 = scalar_select %p570, %s36, 0
        %s572 = smul.u32 16, %s571
        %p573 = scmp.lt.s32.totalorder %s36, 5
        %s574 = scalar_select %p573, %s36, 5
        %s575 = smul.u32 16, %s574
        %p576 = scmp.lt.s32.totalorder %s36, 5
        %s577 = scalar_select %p576, %s36, 5
        %s578 = smul.u32 16, %s577
        %p579 = scmp.lt.s32.totalorder %s35, 0
        %s580 = scalar_select %p579, %s35, 0
        %s581 = smul.addr %s580, 8
        %s582 = scalar_lea.vmem %s8, %s581
        %p584 = scmp.eq.s32.totalorder %s36, 0
        // Predicated region
        $region77: #{tpu_custom_call.1} parent=51 // pred_check
          %p585 = pneg %p584
        $region78: #{tpu_custom_call.1} parent=51 // pred_check_branch
          %587 = sbr.rel (%p585) target = $region80
        $region79: #{tpu_custom_call.1} parent=51 // pred_region
          %v588 = vld [vmem:[%s6] sm:$0x1]
          %v590 = vlaneseq
          %v591 = vshrl.u32 %v590, 7
          %v592 = vsub.s32 0, %v591
          %v593 = vrot.slane %v588, %v592
          %595 = vst [vmem:[#allocation2] sm:$0xff] %v593
          %v596 = vld [vmem:[%s7] sm:$0x1]
          %v598 = vlaneseq
          %v599 = vshrl.u32 %v598, 7
          %v600 = vsub.s32 0, %v599
          %v601 = vrot.slane %v596, %v600
          %603 = vst [vmem:[#allocation3] sm:$0xff] %v601
        $region80: #{tpu_custom_call.1} parent=51 // pred_fallthru
          _
        %p604 = scmp.lt.s32.totalorder %s36, 1
        // Predicated region
        $region81: #{tpu_custom_call.1} parent=51 // pred_check
          %p605 = pneg %p604
        $region82: #{tpu_custom_call.1} parent=51 // pred_check_branch
          %607 = sbr.rel (%p605) target = $region84
        $region83: #{tpu_custom_call.1} parent=51 // pred_region
          %v608 = vld [vmem:[#allocation2] sm:$0xff]
          %v609 = vld [vmem:[%s462] sm:$0xf]
          %v610 = vld [vmem:[%s489] sm:$0xf]
          %v611 = vld [vmem:[%s489 + $0x4] sm:$0xf]
          %v612 = vld [vmem:[%s489 + $0x8] sm:$0xf]
          %v613 = vld [vmem:[%s489 + $0xc] sm:$0xf]
          %v614 = vld [vmem:[%s489 + $0x10] sm:$0xf]
          %v615 = vld [vmem:[%s489 + $0x14] sm:$0xf]
          %v616 = vld [vmem:[%s489 + $0x18] sm:$0xf]
          %v617 = vld [vmem:[%s489 + $0x1c] sm:$0xf]
          %v618 = vld [vmem:[%s489 + $0x20] sm:$0xf]
          %v619 = vld [vmem:[%s489 + $0x24] sm:$0xf]
          %v620 = vld [vmem:[%s489 + $0x28] sm:$0xf]
          %v621 = vld [vmem:[%s489 + $0x2c] sm:$0xf]
          %v622 = vld [vmem:[%s489 + $0x30] sm:$0xf]
          %v623 = vld [vmem:[%s489 + $0x34] sm:$0xf]
          %v624 = vld [vmem:[%s489 + $0x38] sm:$0xf]
          %v625 = vld [vmem:[%s489 + $0x3c] sm:$0xf]
          %v642 = vunpack.c.l.b16 %v610
          %v643 = vunpack.c.l.b16 %v611
          %v644 = vunpack.c.l.b16 %v612
          %v645 = vunpack.c.l.b16 %v613
          %v646 = vunpack.c.l.b16 %v614
          %v647 = vunpack.c.l.b16 %v615
          %v648 = vunpack.c.l.b16 %v616
          %v649 = vunpack.c.l.b16 %v617
          %v650 = vunpack.c.l.b16 %v618
          %v651 = vunpack.c.l.b16 %v619
          %v652 = vunpack.c.l.b16 %v620
          %v653 = vunpack.c.l.b16 %v621
          %v654 = vunpack.c.l.b16 %v622
          %v655 = vunpack.c.l.b16 %v623
          %v656 = vunpack.c.l.b16 %v624
          %v657 = vunpack.c.l.b16 %v625
          %v658 = vpack.c.b16 %v643, %v642
          %v659 = vpack.c.b16 %v645, %v644
          %v660 = vpack.c.b16 %v647, %v646
          %v661 = vpack.c.b16 %v649, %v648
          %v662 = vpack.c.b16 %v651, %v650
          %v663 = vpack.c.b16 %v653, %v652
          %v664 = vpack.c.b16 %v655, %v654
          %v665 = vpack.c.b16 %v657, %v656
          %674 = vmatprep.subr.bf16.mxu0 0
          %675 = vmatpush1.bf16.msra.mxu0 %v665
          %676 = vmatprep.subr.bf16.mxu0 0
          %677 = vmatpush1.bf16.msra.mxu0 %v664
          %678 = vmatprep.subr.bf16.mxu0 0
          %679 = vmatpush1.bf16.msra.mxu0 %v663
          %680 = vmatprep.subr.bf16.mxu0 0
          %681 = vmatpush1.bf16.msra.mxu0 %v662
          %682 = vmatprep.subr.bf16.mxu0 0
          %683 = vmatpush1.bf16.msra.mxu0 %v661
          %684 = vmatprep.subr.bf16.mxu0 0
          %685 = vmatpush1.bf16.msra.mxu0 %v660
          %686 = vmatprep.subr.bf16.mxu0 0
          %687 = vmatpush1.bf16.msra.mxu0 %v659
          %688 = vmatprep.subr.bf16.mxu0 0
          %689 = vmatpush1.bf16.msra.mxu0 %v658
          %690 = vmatprep.subr.bf16.mxu0 0
          %691 = vmatpush2.bf16.msra.mxu0 0
          %692 = vmatprep.subr.bf16.mxu0 0
          %693 = vmatpush2.bf16.msra.mxu0 0
          %694 = vmatprep.subr.bf16.mxu0 0
          %695 = vmatpush2.bf16.msra.mxu0 0
          %696 = vmatprep.subr.bf16.mxu0 0
          %697 = vmatpush2.bf16.msra.mxu0 0
          %698 = vmatprep.subr.bf16.mxu0 0
          %699 = vmatpush2.bf16.msra.mxu0 0
          %700 = vmatprep.subr.bf16.mxu0 0
          %701 = vmatpush2.bf16.msra.mxu0 0
          %702 = vmatprep.subr.bf16.mxu0 0
          %703 = vmatpush2.bf16.msra.mxu0 0
          %704 = vmatprep.subr.bf16.mxu0 0
          %705 = vmatpush2.bf16.msra.mxu0 0
          %706 = vmatprep.mubr.bf16.mxu0 0
          %707 = vmatmul.mubr.bf16.gmra.mxu0 %v609
          %v708 = vpop.f32.mrf.mxu0
          %v709 = vadd.f32 0.0, %v708
          %v710 = vpop.f32.mrf.mxu0
          %v711 = vpop.f32.mrf.mxu0
          %v712 = vpop.f32.mrf.mxu0
          %713 = vdwg.mxu0
          %v714 = vadd.f32 %v608, %v709
          %715 = vst [vmem:[#allocation2] sm:$0xff] %v714
        $region84: #{tpu_custom_call.1} parent=51 // pred_fallthru
          _
        %v716 = vld [vmem:[#allocation3] sm:$0xff]
        %v717 = vld [vmem:[%s480] sm:$0xf]
        %v718 = vld [vmem:[%s507] sm:$0xf]
        %v719 = vld [vmem:[%s507 + $0x4] sm:$0xf]
        %v720 = vld [vmem:[%s507 + $0x8] sm:$0xf]
        %v721 = vld [vmem:[%s507 + $0xc] sm:$0xf]
        %v722 = vld [vmem:[%s507 + $0x10] sm:$0xf]
        %v723 = vld [vmem:[%s507 + $0x14] sm:$0xf]
        %v724 = vld [vmem:[%s507 + $0x18] sm:$0xf]
        %v725 = vld [vmem:[%s507 + $0x1c] sm:$0xf]
        %v726 = vld [vmem:[%s507 + $0x20] sm:$0xf]
        %v727 = vld [vmem:[%s507 + $0x24] sm:$0xf]
        %v728 = vld [vmem:[%s507 + $0x28] sm:$0xf]
        %v729 = vld [vmem:[%s507 + $0x2c] sm:$0xf]
        %v730 = vld [vmem:[%s507 + $0x30] sm:$0xf]
        %v731 = vld [vmem:[%s507 + $0x34] sm:$0xf]
        %v732 = vld [vmem:[%s507 + $0x38] sm:$0xf]
        %v733 = vld [vmem:[%s507 + $0x3c] sm:$0xf]
        %v750 = vunpack.c.l.b16 %v718
        %v751 = vunpack.c.l.b16 %v719
        %v752 = vunpack.c.l.b16 %v720
        %v753 = vunpack.c.l.b16 %v721
        %v754 = vunpack.c.l.b16 %v722
        %v755 = vunpack.c.l.b16 %v723
        %v756 = vunpack.c.l.b16 %v724
        %v757 = vunpack.c.l.b16 %v725
        %v758 = vunpack.c.l.b16 %v726
        %v759 = vunpack.c.l.b16 %v727
        %v760 = vunpack.c.l.b16 %v728
        %v761 = vunpack.c.l.b16 %v729
        %v762 = vunpack.c.l.b16 %v730
        %v763 = vunpack.c.l.b16 %v731
        %v764 = vunpack.c.l.b16 %v732
        %v765 = vunpack.c.l.b16 %v733
        %v766 = vpack.c.b16 %v751, %v750
        %v767 = vpack.c.b16 %v753, %v752
        %v768 = vpack.c.b16 %v755, %v754
        %v769 = vpack.c.b16 %v757, %v756
        %v770 = vpack.c.b16 %v759, %v758
        %v771 = vpack.c.b16 %v761, %v760
        %v772 = vpack.c.b16 %v763, %v762
        %v773 = vpack.c.b16 %v765, %v764
        %782 = vmatprep.subr.bf16.mxu0 0
        %783 = vmatpush1.bf16.msra.mxu0 %v773
        %784 = vmatprep.subr.bf16.mxu0 0
        %785 = vmatpush1.bf16.msra.mxu0 %v772
        %786 = vmatprep.subr.bf16.mxu0 0
        %787 = vmatpush1.bf16.msra.mxu0 %v771
        %788 = vmatprep.subr.bf16.mxu0 0
        %789 = vmatpush1.bf16.msra.mxu0 %v770
        %790 = vmatprep.subr.bf16.mxu0 0
        %791 = vmatpush1.bf16.msra.mxu0 %v769
        %792 = vmatprep.subr.bf16.mxu0 0
        %793 = vmatpush1.bf16.msra.mxu0 %v768
        %794 = vmatprep.subr.bf16.mxu0 0
        %795 = vmatpush1.bf16.msra.mxu0 %v767
        %796 = vmatprep.subr.bf16.mxu0 0
        %797 = vmatpush1.bf16.msra.mxu0 %v766
        %798 = vmatprep.subr.bf16.mxu0 0
        %799 = vmatpush2.bf16.msra.mxu0 0
        %800 = vmatprep.subr.bf16.mxu0 0
        %801 = vmatpush2.bf16.msra.mxu0 0
        %802 = vmatprep.subr.bf16.mxu0 0
        %803 = vmatpush2.bf16.msra.mxu0 0
        %804 = vmatprep.subr.bf16.mxu0 0
        %805 = vmatpush2.bf16.msra.mxu0 0
        %806 = vmatprep.subr.bf16.mxu0 0
        %807 = vmatpush2.bf16.msra.mxu0 0
        %808 = vmatprep.subr.bf16.mxu0 0
        %809 = vmatpush2.bf16.msra.mxu0 0
        %810 = vmatprep.subr.bf16.mxu0 0
        %811 = vmatpush2.bf16.msra.mxu0 0
        %812 = vmatprep.subr.bf16.mxu0 0
        %813 = vmatpush2.bf16.msra.mxu0 0
        %814 = vmatprep.mubr.bf16.mxu0 0
        %815 = vmatmul.mubr.bf16.gmra.mxu0 %v717
        %v816 = vpop.f32.mrf.mxu0
        %v817 = vadd.f32 0.0, %v816
        %v818 = vpop.f32.mrf.mxu0
        %v819 = vpop.f32.mrf.mxu0
        %v820 = vpop.f32.mrf.mxu0
        %821 = vdwg.mxu0
        %v822 = vld [vmem:[%s471] sm:$0xf]
        %v823 = vld [vmem:[%s498] sm:$0xf]
        %v824 = vld [vmem:[%s498 + $0x4] sm:$0xf]
        %v825 = vld [vmem:[%s498 + $0x8] sm:$0xf]
        %v826 = vld [vmem:[%s498 + $0xc] sm:$0xf]
        %v827 = vld [vmem:[%s498 + $0x10] sm:$0xf]
        %v828 = vld [vmem:[%s498 + $0x14] sm:$0xf]
        %v829 = vld [vmem:[%s498 + $0x18] sm:$0xf]
        %v830 = vld [vmem:[%s498 + $0x1c] sm:$0xf]
        %v831 = vld [vmem:[%s498 + $0x20] sm:$0xf]
        %v832 = vld [vmem:[%s498 + $0x24] sm:$0xf]
        %v833 = vld [vmem:[%s498 + $0x28] sm:$0xf]
        %v834 = vld [vmem:[%s498 + $0x2c] sm:$0xf]
        %v835 = vld [vmem:[%s498 + $0x30] sm:$0xf]
        %v836 = vld [vmem:[%s498 + $0x34] sm:$0xf]
        %v837 = vld [vmem:[%s498 + $0x38] sm:$0xf]
        %v838 = vld [vmem:[%s498 + $0x3c] sm:$0xf]
        %v855 = vunpack.c.l.b16 %v823
        %v856 = vunpack.c.l.b16 %v824
        %v857 = vunpack.c.l.b16 %v825
        %v858 = vunpack.c.l.b16 %v826
        %v859 = vunpack.c.l.b16 %v827
        %v860 = vunpack.c.l.b16 %v828
        %v861 = vunpack.c.l.b16 %v829
        %v862 = vunpack.c.l.b16 %v830
        %v863 = vunpack.c.l.b16 %v831
        %v864 = vunpack.c.l.b16 %v832
        %v865 = vunpack.c.l.b16 %v833
        %v866 = vunpack.c.l.b16 %v834
        %v867 = vunpack.c.l.b16 %v835
        %v868 = vunpack.c.l.b16 %v836
        %v869 = vunpack.c.l.b16 %v837
        %v870 = vunpack.c.l.b16 %v838
        %v871 = vpack.c.b16 %v856, %v855
        %v872 = vpack.c.b16 %v858, %v857
        %v873 = vpack.c.b16 %v860, %v859
        %v874 = vpack.c.b16 %v862, %v861
        %v875 = vpack.c.b16 %v864, %v863
        %v876 = vpack.c.b16 %v866, %v865
        %v877 = vpack.c.b16 %v868, %v867
        %v878 = vpack.c.b16 %v870, %v869
        %887 = vmatprep.subr.bf16.mxu0 0
        %888 = vmatpush1.bf16.msra.mxu0 %v878
        %889 = vmatprep.subr.bf16.mxu0 0
        %890 = vmatpush1.bf16.msra.mxu0 %v877
        %891 = vmatprep.subr.bf16.mxu0 0
        %892 = vmatpush1.bf16.msra.mxu0 %v876
        %893 = vmatprep.subr.bf16.mxu0 0
        %894 = vmatpush1.bf16.msra.mxu0 %v875
        %895 = vmatprep.subr.bf16.mxu0 0
        %896 = vmatpush1.bf16.msra.mxu0 %v874
        %897 = vmatprep.subr.bf16.mxu0 0
        %898 = vmatpush1.bf16.msra.mxu0 %v873
        %899 = vmatprep.subr.bf16.mxu0 0
        %900 = vmatpush1.bf16.msra.mxu0 %v872
        %901 = vmatprep.subr.bf16.mxu0 0
        %902 = vmatpush1.bf16.msra.mxu0 %v871
        %903 = vmatprep.subr.bf16.mxu0 0
        %904 = vmatpush2.bf16.msra.mxu0 0
        %905 = vmatprep.subr.bf16.mxu0 0
        %906 = vmatpush2.bf16.msra.mxu0 0
        %907 = vmatprep.subr.bf16.mxu0 0
        %908 = vmatpush2.bf16.msra.mxu0 0
        %909 = vmatprep.subr.bf16.mxu0 0
        %910 = vmatpush2.bf16.msra.mxu0 0
        %911 = vmatprep.subr.bf16.mxu0 0
        %912 = vmatpush2.bf16.msra.mxu0 0
        %913 = vmatprep.subr.bf16.mxu0 0
        %914 = vmatpush2.bf16.msra.mxu0 0
        %915 = vmatprep.subr.bf16.mxu0 0
        %916 = vmatpush2.bf16.msra.mxu0 0
        %917 = vmatprep.subr.bf16.mxu0 0
        %918 = vmatpush2.bf16.msra.mxu0 0
        %919 = vmatprep.mubr.bf16.mxu0 0
        %920 = vmatmul.mubr.bf16.gmra.mxu0 %v822
        %v921 = vpop.f32.mrf.mxu0
        %v922 = vadd.f32 0.0, %v921
        %v923 = vpop.f32.mrf.mxu0
        %v924 = vpop.f32.mrf.mxu0
        %v925 = vpop.f32.mrf.mxu0
        %926 = vdwg.mxu0
        %v927 = vsub.f32 %v817, %v922
        %v928 = vadd.f32 %v716, %v927
        %929 = vst [vmem:[#allocation3] sm:$0xff] %v928
        %p930 = scmp.eq.s32.totalorder %s36, 5
        // Predicated region
        $region85: #{tpu_custom_call.1} parent=51 // pred_check
          %p931 = pneg %p930
        $region86: #{tpu_custom_call.1} parent=51 // pred_check_branch
          %933 = sbr.rel (%p931) target = $region88
        $region87: #{tpu_custom_call.1} parent=51 // pred_region
          %v934 = vld [vmem:[#allocation2] sm:$0xff]
          %v935 = vld [vmem:[#allocation3] sm:$0xff]
          %v936 = vmul.f32 %v934, %v935
          %937 = vadd.xlane.f32.xlu0 %v936
          %v938 = vpop.xlane.xlu0 %937
          %v939 = vmax.f32 %v938, 0.0
          %vm940 = vcmask 7168
          %941 = vst.msk [vmem:[%s582] sm:$0xff] %vm940, %v939
        $region88: #{tpu_custom_call.1} parent=51 // pred_fallthru
          _
        %p942 = scmp.lt.s32.totalorder %s35, 0
        %s943 = scalar_select %p942, %s35, 0
        %s944 = smul.addr %s943, 8
        %s945 = scalar_lea.vmem %s8, %s944
        // Predicated region
        $region89: #{tpu_custom_call.1} parent=51 // pred_check
          %p946 = pneg %p289
        $region90: #{tpu_custom_call.1} parent=51 // pred_check_branch
          %948 = sbr.rel (%p946) target = $region92
        $region91: #{tpu_custom_call.1} parent=51 // pred_region
          _
        $region92: #{tpu_custom_call.1} parent=51 // pred_fallthru
          _
        // Predicated region
        $region93: #{tpu_custom_call.1} parent=51 // pred_check
          %p949 = pneg %p289
        $region94: #{tpu_custom_call.1} parent=51 // pred_check_branch
          %951 = sbr.rel (%p949) target = $region96
        $region95: #{tpu_custom_call.1} parent=51 // pred_region
          %p952 = scmp.lt.s32.totalorder %s35, 0
          %s953 = scalar_select %p952, %s35, 0
          %s954 = smul.addr %s953, 8
          %s955 = scalar_lea.vmem %s8, %s954
        $region96: #{tpu_custom_call.1} parent=51 // pred_fallthru
          _
      $region52: #{tpu_custom_call.1} parent=5 // pred_fallthru
        _
      %p956 = scmp.le.s32.totalorder 2, %s26
      // Predicated region
      $region97: #{tpu_custom_call.1} parent=5 // pred_check
        %p957 = pneg %p956
      $region98: #{tpu_custom_call.1} parent=5 // pred_check_branch
        %959 = sbr.rel (%p957) target = $region100
      $region99: #{tpu_custom_call.1} parent=5 // pred_region
        %s960 = ssub.s32 %s26, 2
      $region100: #{tpu_custom_call.1} parent=5 // pred_fallthru
        _
    $region6: #{tpu_custom_call.1} parent=1 // loop_footer
      %s30 = sadd.s32 1, %s26
    $region7: #{tpu_custom_call.1} parent=1 // loop_footer_branch
      %25 = sbr.rel target = $region3
    $region8: #{tpu_custom_call.1} parent=1 // loop_exit
      _
    %961 = vsyncpa [#allocation5], 1
    %s962 = scalar_lea.sflag [#allocation5], 1
    %963 = vsyncpa %s962, 1
    %964 = vsyncpa [#allocation7], 1
    %s965 = scalar_lea.sflag [#allocation7], 1
    %966 = vsyncpa %s965, 1
    %967 = vsyncpa [#allocation10], 1
    %s968 = scalar_lea.sflag [#allocation10], 1
    %969 = vsyncpa %s968, 1
    %970 = vsyncpa [#allocation13], 1
    %s971 = scalar_lea.sflag [#allocation13], 1
    %972 = vsyncpa %s971, 1

</llo_original>
